<compile_context>
chip_gen: v5e
topology: v5e:2x2
jax: 0.10.0
libtpu: 0.0.40
codegen_flags: <defaults>
</compile_context>

<pallas_src>
import jax
import jax.numpy as jnp
from jax.experimental import pallas as pl
from jax.experimental.pallas import tpu as pltpu

_LANE = 128                     # vreg lane width (last dim multiple of 128)
_SUBLANE = 8                    # f32 sublane quantum
_QUANTUM = _SUBLANE * _LANE     # 1024 elements: minimal lane-dense f32 tile
_TM_MAX = 2048                  # rows per tile cap -> 1 MiB/block (v5e-safe)
_TARGET_STEPS = 8               # keep ~8 grid steps for pipelining / megacore


def affine_kernel(scale_ref, x_ref, o_ref):
    # scale_ref: SMEM f32[2] = [w_eff, b_eff]
    # x_ref / o_ref: lane-dense (tm, 128) f32 VMEM tiles.
    # Single fused multiply-add on the VPU; scalars broadcast from SMEM.
    o_ref[...] = x_ref[...] * scale_ref[0] + scale_ref[1]


def _choose_tm(rows):
    """Adaptive tile rows: aim for ~_TARGET_STEPS grid steps, sublane-aligned,
    clamped to [8, _TM_MAX].  The final block may be ragged (grid = cdiv);
    Pallas masks the out-of-bounds portion of the write."""
    tm = -(-rows // _TARGET_STEPS)              # ceil(rows / target_steps)
    tm = -(-tm // _SUBLANE) * _SUBLANE          # round up to sublane multiple
    return max(_SUBLANE, min(tm, _TM_MAX))


def _mlp_forward_impl(x, w1, b1, w2, b2, w3, b3):
    """Forward of MyModel.  x: (N, 1) f32.  Weights stored as
    (in_features, out_features) (PyTorch weight transposed); biases (1, out)."""
    N = x.shape[0]

    # ---- Algebraic collapse (exact: composition of affine maps). ----
    w_eff = (w1 @ w2 @ w3)[0, 0]                      # scalar
    b_eff = (b1 @ w2 @ w3 + b2 @ w3 + b3)[0, 0]       # scalar
    scalars = jnp.stack([w_eff, b_eff]).astype(jnp.float32)  # (2,)

    # ---- Lane-dense layout: batch along the lane axis. ----
    # Pad only to the 1024-element quantum (and skip the pad entirely when N
    # already divides); the (N,1)->(rows,128) reshape is a free bitcast.
    n_pad = pl.cdiv(N, _QUANTUM) * _QUANTUM
    x_flat = x.reshape(-1)
    if n_pad != N:
        x_flat = jnp.pad(x_flat, (0, n_pad - N))      # zero-fill tail
    x2d = x_flat.reshape(n_pad // _LANE, _LANE)       # (rows, 128), rows % 8 == 0
    rows = x2d.shape[0]

    tm = _choose_tm(rows)
    grid = (pl.cdiv(rows, tm),)                       # ragged final block OK

    out2d = pl.pallas_call(
        affine_kernel,
        out_shape=jax.ShapeDtypeStruct((rows, _LANE), jnp.float32),
        grid=grid,
        in_specs=[
            # Two effective scalars in SMEM instead of 6 tiled weight DMAs.
            pl.BlockSpec(memory_space=pltpu.MemorySpace.SMEM),
            pl.BlockSpec((tm, _LANE), lambda i: (i, 0)),
        ],
        out_specs=pl.BlockSpec((tm, _LANE), lambda i: (i, 0)),
        compiler_params=pltpu.CompilerParams(
            dimension_semantics=("parallel",),        # megacore tile split on v7x
        ),
    )(scalars, x2d)

    # Restore (N, 1).  Under jit this fuses with the kernel's consumer.
    return out2d.reshape(-1)[:N].reshape(N, 1)


# One jitted dispatch: scalar collapse + pad + pallas_call + slice.
mlp_forward = jax.jit(_mlp_forward_impl)


def init_linear(key, fan_in, fan_out):
    # Deterministic init mimicking PyTorch's default U(-1/sqrt(fan_in), 1/sqrt(fan_in)).
    kw, kb = jax.random.split(key)
    bound = 1.0 / jnp.sqrt(float(fan_in))
    # Stored as (in_features, out_features), i.e. PyTorch weight transposed.
    w = jax.random.uniform(kw, (fan_in, fan_out), jnp.float32, -bound, bound)
    b = jax.random.uniform(kb, (1, fan_out), jnp.float32, -bound, bound)
    return w, b


def _reference(x, w1, b1, w2, b2, w3, b3):
    return ((x @ w1 + b1) @ w2 + b2) @ w3 + b3


if __name__ == "__main__":
    key = jax.random.PRNGKey(0)
    kx, k1, k2, k3, kx2, kx3 = jax.random.split(key, 6)

    w1, b1 = init_linear(k1, 1, 10)    # lr  : Linear(1, 10)
    w2, b2 = init_linear(k2, 10, 20)   # lr2 : Linear(10, 20)
    w3, b3 = init_linear(k3, 20, 1)    # lr3 : Linear(20, 1)

    # Small batch (single tile, N % 1024 != 0 -> pad path).
    N = 8
    x = jax.random.normal(kx, (N, 1), jnp.float32)
    out = mlp_forward(x, w1, b1, w2, b2, w3, b3)
    jax.block_until_ready(out)
    ref = _reference(x, w1, b1, w2, b2, w3, b3)
    assert out.shape == (N, 1)
    assert jnp.allclose(out, ref, atol=1e-5, rtol=1e-5), "mismatch (small N)"

    # Medium batch: multi-step grid, exact tile divide.
    N2 = 3000
    x2 = jax.random.normal(kx2, (N2, 1), jnp.float32)
    out2 = mlp_forward(x2, w1, b1, w2, b2, w3, b3)
    jax.block_until_ready(out2)
    ref2 = _reference(x2, w1, b1, w2, b2, w3, b3)
    assert out2.shape == (N2, 1)
    assert jnp.allclose(out2, ref2, atol=1e-5, rtol=1e-5), "mismatch (medium N)"

    # Larger batch exercising the adaptive-tile + ragged-final-block path.
    N3 = 20000
    x3 = jax.random.normal(kx3, (N3, 1), jnp.float32)
    out3 = mlp_forward(x3, w1, b1, w2, b2, w3, b3)
    jax.block_until_ready(out3)
    ref3 = _reference(x3, w1, b1, w2, b2, w3, b3)
    assert out3.shape == (N3, 1)
    assert jnp.allclose(out3, ref3, atol=1e-5, rtol=1e-5), "mismatch (large N)"

    print("KERNEL_OK")
</pallas_src>

<mosaic_0001>
module attributes {stable_mosaic.version = 11 : i64} {
  func.func @affine_kernel(%arg0: i32, %arg1: memref<2xf32, #tpu.memory_space<smem>>, %arg2: memref<8x128xf32, #tpu.memory_space<vmem>>, %arg3: memref<8x128xf32, #tpu.memory_space<vmem>>) attributes {dimension_semantics = [#tpu.dimension_semantics<parallel>], iteration_bounds = array<i64: 1>, scalar_prefetch = 0 : i64, scratch_operands = 0 : i64, tpu.core_type = #tpu.core_type<tc>, window_params = [{transform_indices = @transform_0, window_bounds = array<i64: 2>}, {transform_indices = @transform_1, window_bounds = array<i64: 8, 128>}, {transform_indices = @transform_2, window_bounds = array<i64: 8, 128>}]} {
    %c0 = arith.constant 0 : index
    %c0_0 = arith.constant 0 : index
    %0 = vector.load %arg2[%c0, %c0_0] : memref<8x128xf32, #tpu.memory_space<vmem>>, vector<8x128xf32>
    %c0_1 = arith.constant 0 : index
    %1 = memref.load %arg1[%c0_1] : memref<2xf32, #tpu.memory_space<smem>>
    %2 = vector.broadcast %1 : f32 to vector<8x128xf32>
    %3 = arith.mulf %0, %2 : vector<8x128xf32>
    %c1 = arith.constant 1 : index
    %4 = memref.load %arg1[%c1] : memref<2xf32, #tpu.memory_space<smem>>
    %5 = vector.broadcast %4 : f32 to vector<8x128xf32>
    %6 = arith.addf %3, %5 : vector<8x128xf32>
    %c0_2 = arith.constant 0 : index
    %c0_3 = arith.constant 0 : index
    %7 = vector.load %arg3[%c0_2, %c0_3] : memref<8x128xf32, #tpu.memory_space<vmem>>, vector<8x128xf32>
    tpu.vector_store %arg3[%c0_2, %c0_3], %6 {strides = array<i32>} : memref<8x128xf32, #tpu.memory_space<vmem>>, vector<8x128xf32>,
    return
  }
  func.func @transform_0(%arg0: i32) -> i32 {
    %c0_i32 = arith.constant 0 : i32
    %c0_i32_0 = arith.constant 0 : i32
    return %c0_i32 : i32
  }
  func.func @transform_1(%arg0: i32) -> (i32, i32) {
    %c0_i32 = arith.constant 0 : i32
    %c0_i32_0 = arith.constant 0 : i32
    return %arg0, %c0_i32 : i32, i32
  }
  func.func @transform_2(%arg0: i32) -> (i32, i32) {
    %c0_i32 = arith.constant 0 : i32
    %c0_i32_0 = arith.constant 0 : i32
    return %arg0, %c0_i32 : i32, i32
  }
}

</mosaic_0001>

<llo_original>
// kernel: _mlp_forward_impl.1
$region0: #{_mlp_forward_impl.1}
  #allocation0 [shape = 'u32[]', space=smem, size = 0x4, offset = 0x4, fixed_abs, tag = 'smem constant byte address 0x4 - core index']
  #allocation1 [shape = 'u32[72,128]{1,0:T(1,128)}', space=vmem, size = 0x9000, scoped, tag = 'internal scratch']
  %s0 = inlined_call_operand.vmem [shape: f32[2], index: 0, kind: input, shape index: {}]
  %s1 = inlined_call_operand.vmem [shape: f32[8,128], index: 1, kind: input, shape index: {}]
  %s2 = inlined_call_operand.vmem [shape: f32[8,128], index: 2, kind: output, shape index: {}]
  %s3 = sld [smem:[#allocation0]]
  $region22: #{_mlp_forward_impl.1} parent=0
    _
  %s5 = ssub.s32 1, %s3
  %s6 = scalar_select 0, %s5, %s3
  $region1: #{_mlp_forward_impl.1} parent=0
    #allocation2 [shape = 'u8[512]{0}', space=smem, size = 0x200, scoped, tag = 'input window, operand 0, single buffered']
    #allocation3 [shape = 's32[1]{0}', space=sflag, size = 0x4, scoped, tag = 'scoped memory for _mlp_forward_impl.1']
    %7 = vsyncpa [#allocation3], 0
    // Predicated region
    $region2: #{_mlp_forward_impl.1} parent=1 // pred_check
      _
    $region3: #{_mlp_forward_impl.1} parent=1 // pred_check_branch
      %9 = sbr.rel (0) target = $region5
    $region4: #{_mlp_forward_impl.1} parent=1 // pred_region
      %11 = vsyncadd [#allocation3], 0
      %s13 = sshll.u32 %s0, 4
      %s14 = int_to_ptr.vmem [resolvable:$true] %s13
      %16 = dma.vmem_to_smem %s14, 16, [#allocation2], [#allocation3]
    $region5: #{_mlp_forward_impl.1} parent=1 // pred_fallthru
      _
    // Predicated region
    $region6: #{_mlp_forward_impl.1} parent=1 // pred_check
      _
    $region7: #{_mlp_forward_impl.1} parent=1 // pred_check_branch
      %18 = sbr.rel (0) target = $region9
    $region8: #{_mlp_forward_impl.1} parent=1 // pred_region
      _
    $region9: #{_mlp_forward_impl.1} parent=1 // pred_fallthru
      _
    // Predicated region
    $region10: #{_mlp_forward_impl.1} parent=1 // pred_check
      _
    $region11: #{_mlp_forward_impl.1} parent=1 // pred_check_branch
      %20 = sbr.rel (0) target = $region13
    $region12: #{_mlp_forward_impl.1} parent=1 // pred_region
      %22 = dma.done [#allocation3], 16
    $region13: #{_mlp_forward_impl.1} parent=1 // pred_fallthru
      _
    %23 = sfence
    %v24 = vld [vmem:[%s1] sm:$0xff]
    %s25 = sld [smem:[#allocation2]]
    %v26 = vstv %s25
    %v27 = vmul.f32 %v24, %v26
    %s28 = sld [smem:[#allocation2 + $0x1]]
    %v29 = vstv %s28
    %v30 = vadd.f32 %v27, %v29
    %31 = vst [vmem:[%s2] sm:$0xff] %v30
    // Predicated region
    $region14: #{_mlp_forward_impl.1} parent=1 // pred_check
      _
    $region15: #{_mlp_forward_impl.1} parent=1 // pred_check_branch
      %33 = sbr.rel (0) target = $region17
    $region16: #{_mlp_forward_impl.1} parent=1 // pred_region
      _
    $region17: #{_mlp_forward_impl.1} parent=1 // pred_fallthru
      _
    // Predicated region
    $region18: #{_mlp_forward_impl.1} parent=1 // pred_check
      _
    $region19: #{_mlp_forward_impl.1} parent=1 // pred_check_branch
      %35 = sbr.rel (0) target = $region21
    $region20: #{_mlp_forward_impl.1} parent=1 // pred_region
      _
    $region21: #{_mlp_forward_impl.1} parent=1 // pred_fallthru
      _
    %36 = vsyncpa [#allocation3], 1

</llo_original>
